<compile_context>
chip_gen: v7x
topology: tpu7x:2x2x1
jax: 0.10.0
libtpu: 0.0.40
codegen_flags: <defaults>
</compile_context>

<pallas_src>
import math
from functools import partial

import jax
import jax.numpy as jnp
from jax.experimental import pallas as pl
from jax.experimental.pallas import tpu as pltpu


def _round_up(a, b):
    return ((a + b - 1) // b) * b


def _stft_kernel(basis_ref, frames_ref, out_ref):
    """One grid step -> one (F2, tile_frames) block of the spectrogram.

    basis_ref : (F2, K) VMEM      fused [win*cos ; -win*sin]/sqrt(n_dft)
                                  (constant index_map -> stays resident)
    frames_ref: (1, K, tile)      frame matrix block, samples on sublanes,
                                  frames on lanes (auto-pipelined)
    out_ref   : (1, F2, tile)     lane-dense output block (frames on lanes)
    """
    out_ref[0] = jnp.dot(
        basis_ref[...], frames_ref[0],
        preferred_element_type=jnp.float32).astype(out_ref.dtype)


def stft_pallas(x, n_dft=64, hop_size=32, win_length=None, onesided=True,
                is_complex=True, compute_dtype=jnp.bfloat16,
                max_tile_frames=1024):
    assert onesided, "only onesided=True is implemented (module default)"
    if win_length is None:
        win_length = n_dft
    hop = hop_size

    B, C, T = x.shape
    BC = B * C
    x_flat = x.reshape(BC, T).astype(compute_dtype)

    F = n_dft // 2                    # onesided bins minus the dropped DC bin
    F2 = 2 * F                        # real rows stacked over imag rows
    r = -(-n_dft // hop)              # hop-blocks covering one DFT window
    K = r * hop                       # matmul depth (window zero-padded to r*hop)

    # --- periodic Hamming window, centered zero-pad to n_dft --------------------
    n = jnp.arange(win_length, dtype=jnp.float32)
    win = 0.54 - 0.46 * jnp.cos(2.0 * jnp.pi * n / win_length)
    if win_length < n_dft:
        left = (n_dft - win_length) // 2
        win = jnp.pad(win, (left, n_dft - win_length - left))

    # --- fused DFT basis: window + 1/sqrt(n_dft) folded in, DC bin dropped,
    #     real rows stacked over imag rows, zero-padded to K = r*hop ------------
    k = jnp.arange(n_dft, dtype=jnp.float32)
    f = jnp.arange(1, F + 1, dtype=jnp.float32)
    ang = 2.0 * jnp.pi * f[:, None] * k[None, :] / n_dft
    wrow = (win / math.sqrt(n_dft))[None, :]
    basis = jnp.concatenate([jnp.cos(ang) * wrow, -jnp.sin(ang) * wrow], axis=0)
    basis = jnp.pad(basis, ((0, 0), (0, K - n_dft))).astype(compute_dtype)  # (F2, K)

    # --- center=True reflect padding --------------------------------------------
    pad = n_dft // 2
    x_pad = jnp.pad(x_flat, ((0, 0), (pad, pad)), mode="reflect")
    t_pad = T + 2 * pad
    n_frames = 1 + (t_pad - n_dft) // hop

    # --- balanced frame tiling: frames live on the lane axis --------------------
    max_tile = max(128, (max_tile_frames // 128) * 128)     # keep multiple of 128
    n_tiles = pl.cdiv(n_frames, max_tile)
    tile_frames = _round_up(pl.cdiv(n_frames, n_tiles), 128)
    n_tiles = pl.cdiv(n_frames, tile_frames)
    n_frames_pad = n_tiles * tile_frames

    # --- frame matrix, sample-major (sublanes) x frame (lanes): ------------------
    #   frames[bc, j*hop + m, c] = x_pad[bc, (c + j)*hop + m]
    # built as r shifted views of the hop-block-transposed signal, so a single
    # rectangular BlockSpec block per grid step feeds one fused K-deep matmul.
    n_cols = max(pl.cdiv(t_pad, hop), n_frames_pad + r - 1)
    x_pad = jnp.pad(x_pad, ((0, 0), (0, n_cols * hop - t_pad)))
    xt = x_pad.reshape(BC, n_cols, hop).transpose(0, 2, 1)          # (BC, hop, n_cols)
    frames = jnp.concatenate(
        [xt[:, :, j:j + n_frames_pad] for j in range(r)], axis=1)   # (BC, K, n_frames_pad)

    out = pl.pallas_call(
        _stft_kernel,
        out_shape=jax.ShapeDtypeStruct((BC, F2, n_frames_pad), jnp.float32),
        grid_spec=pltpu.PrefetchScalarGridSpec(
            num_scalar_prefetch=0,
            grid=(BC, n_tiles),
            in_specs=[
                pl.BlockSpec((F2, K), lambda b, t: (0, 0)),              # basis, resident
                pl.BlockSpec((1, K, tile_frames), lambda b, t: (b, 0, t)),
            ],
            out_specs=pl.BlockSpec((1, F2, tile_frames), lambda b, t: (b, 0, t)),
        ),
        compiler_params=pltpu.CompilerParams(
            dimension_semantics=("parallel", "parallel")),
    )(basis, frames)

    # Already in torch layout: rows = [real(f=1..F), imag(f=1..F)], lanes = frames
    real = out[:, :F, :n_frames].reshape(B, C, F, n_frames)
    imag = out[:, F:, :n_frames].reshape(B, C, F, n_frames)
    if is_complex:
        return jax.lax.complex(real, imag)                  # (B, C, F, n_frames) complex64
    # torch: view_as_real + movedim(-1, 1) -> real/imag axis right after batch dims
    return jnp.stack([real, imag], axis=2)                  # (B, C, 2, F, n_frames)


def _reference_stft(x, n_dft, hop_size, win_length):
    """Plain-JAX f32 reference (rfft) for the correctness check."""
    B, C, T = x.shape
    x_flat = x.reshape(B * C, T).astype(jnp.float32)
    n = jnp.arange(win_length, dtype=jnp.float32)
    win = 0.54 - 0.46 * jnp.cos(2.0 * jnp.pi * n / win_length)
    if win_length < n_dft:
        left = (n_dft - win_length) // 2
        win = jnp.pad(win, (left, n_dft - win_length - left))
    pad = n_dft // 2
    x_pad = jnp.pad(x_flat, ((0, 0), (pad, pad)), mode="reflect")
    n_frames = 1 + T // hop_size
    idx = jnp.arange(n_frames)[:, None] * hop_size + jnp.arange(n_dft)[None, :]
    frames = x_pad[:, idx] * win[None, None, :]
    spec = jnp.fft.rfft(frames, n=n_dft, axis=-1) / jnp.sqrt(jnp.float32(n_dft))
    spec = jnp.transpose(spec, (0, 2, 1))[:, 1:, :]
    n_freq = n_dft // 2 + 1
    return spec.reshape(B, C, n_freq - 1, n_frames)


if __name__ == "__main__":
    # Small shapes consistent with the module: (batch, channels, time)
    B, C, T = 2, 3, 512
    n_dft, hop = 64, 32

    key = jax.random.PRNGKey(0)
    x = jax.random.normal(key, (B, C, T), dtype=jnp.float32)

    y_ref = _reference_stft(x, n_dft, hop, n_dft)
    expected_shape = (B, C, n_dft // 2, 1 + T // hop)

    # f32 compute path: bit-tight check of the STFT structure / semantics.
    f32_fn = jax.jit(partial(stft_pallas, n_dft=n_dft, hop_size=hop,
                             compute_dtype=jnp.float32))
    y32 = jax.block_until_ready(f32_fn(x))
    assert y32.shape == expected_shape, y32.shape
    err32 = float(jnp.max(jnp.abs(y32 - y_ref)))
    assert err32 < 1e-4, f"f32 path max abs error {err32}"

    # Default bf16 path (MXU-native operands, f32 accumulation) -> looser tolerance.
    bf16_fn = jax.jit(partial(stft_pallas, n_dft=n_dft, hop_size=hop))
    ybf = jax.block_until_ready(bf16_fn(x))
    assert ybf.shape == expected_shape, ybf.shape
    errbf = float(jnp.max(jnp.abs(ybf - y_ref)))
    assert errbf < 5e-2, f"bf16 path max abs error {errbf}"

    print("KERNEL_OK")
</pallas_src>

<mosaic_0001>
module attributes {stable_mosaic.version = 11 : i64} {
  func.func @_stft_kernel(%arg0: i32, %arg1: i32, %arg2: memref<64x64xf32, #tpu.memory_space<vmem>>, %arg3: memref<1x64x128xf32, #tpu.memory_space<vmem>>, %arg4: memref<1x64x128xf32, #tpu.memory_space<vmem>>) attributes {dimension_semantics = [#tpu.dimension_semantics<parallel>, #tpu.dimension_semantics<parallel>], iteration_bounds = array<i64: 6, 1>, scalar_prefetch = 0 : i64, scratch_operands = 0 : i64, tpu.core_type = #tpu.core_type<tc>, window_params = [{pipeline_mode = #tpu.pipeline_mode<synchronous>, transform_indices = @transform_0, window_bounds = array<i64: 64, 64>}, {transform_indices = @transform_1, window_bounds = array<i64: 1, 64, 128>}, {transform_indices = @transform_2, window_bounds = array<i64: 1, 64, 128>}]} {
    %c0 = arith.constant 0 : index
    %c0_0 = arith.constant 0 : index
    %0 = vector.load %arg2[%c0, %c0_0] : memref<64x64xf32, #tpu.memory_space<vmem>>, vector<64x64xf32>
    %c0_1 = arith.constant 0 : index
    %c0_2 = arith.constant 0 : index
    %c0_3 = arith.constant 0 : index
    %1 = vector.load %arg3[%c0_1, %c0_2, %c0_3] : memref<1x64x128xf32, #tpu.memory_space<vmem>>, vector<1x64x128xf32>
    %2 = vector.shape_cast %1 : vector<1x64x128xf32> to vector<64x128xf32>
    %cst = arith.constant dense<0.000000e+00> : vector<64x128xf32>
    %3 = tpu.matmul %0, %2, %cst {dimension_numbers = #tpu.dot_dimension_numbers<[1], [0], [0], [1], [0, 0, 1, 1], [], []>} : vector<64x64xf32>, vector<64x128xf32>, vector<64x128xf32> -> vector<64x128xf32>
    %c0_4 = arith.constant 0 : index
    %c0_5 = arith.constant 0 : index
    %c0_6 = arith.constant 0 : index
    %4 = vector.load %arg4[%c0_4, %c0_5, %c0_6] : memref<1x64x128xf32, #tpu.memory_space<vmem>>, vector<1x64x128xf32>
    %5 = vector.shape_cast %4 : vector<1x64x128xf32> to vector<64x128xf32>
    %6 = vector.shape_cast %3 : vector<64x128xf32> to vector<1x64x128xf32>
    tpu.vector_store %arg4[%c0_4, %c0_5, %c0_6], %6 {strides = array<i32>} : memref<1x64x128xf32, #tpu.memory_space<vmem>>, vector<1x64x128xf32>,
    return
  }
  func.func @transform_0(%arg0: i32, %arg1: i32) -> (i32, i32) {
    %c0_i32 = arith.constant 0 : i32
    %c0_i32_0 = arith.constant 0 : i32
    %c0_i32_1 = arith.constant 0 : i32
    return %c0_i32, %c0_i32_0 : i32, i32
  }
  func.func @transform_1(%arg0: i32, %arg1: i32) -> (i32, i32, i32) {
    %c0_i32 = arith.constant 0 : i32
    %c0_i32_0 = arith.constant 0 : i32
    return %arg0, %c0_i32, %arg1 : i32, i32, i32
  }
  func.func @transform_2(%arg0: i32, %arg1: i32) -> (i32, i32, i32) {
    %c0_i32 = arith.constant 0 : i32
    %c0_i32_0 = arith.constant 0 : i32
    return %arg0, %c0_i32, %arg1 : i32, i32, i32
  }
}

</mosaic_0001>

<llo_original>
// kernel: custom-call
$region0: #{custom-call}
  %s0 = inlined_call_operand.vmem [shape: f32[2,3,32,17], index: 0, kind: input, shape index: {}]
  %s1 = inlined_call_operand.vmem [shape: f32[2,3,32,17], index: 1, kind: input, shape index: {}]
  %s2 = inlined_call_operand.hbm [shape: c64[2,3,32,17], index: 2, kind: output, shape index: {}]
  %s3 = scalar_lea.hbm %s2, 1632
  $region1: #{custom-call} parent=0
    #allocation0 [shape = 's32[1]{0}', space=sflag, size = 0x4, scoped, tag = 'scoped memory for custom-call']
    %4 = vsyncpa [#allocation0], 0
    %s5 = sshll.u32 %s0, 4
    %s6 = int_to_ptr.vmem [resolvable:$true] %s5
    %8 = dma.vmem_to_hbm [thread:$0]  %s6, 1632, %s2, [#allocation0]
    %9 = dma.done [#allocation0], 1632
    %10 = vsyncpa [#allocation0], 1
  $region2: #{custom-call} parent=0
    #allocation1 [shape = 's32[1]{0}', space=sflag, size = 0x4, scoped, tag = 'scoped memory for custom-call']
    %11 = vsyncpa [#allocation1], 0
    %s12 = sshll.u32 %s1, 4
    %s13 = int_to_ptr.vmem [resolvable:$true] %s12
    %15 = dma.vmem_to_hbm [thread:$0]  %s13, 1632, %s3, [#allocation1]
    %16 = dma.done [#allocation1], 1632
    %17 = vsyncpa [#allocation1], 1

// kernel: stft_pallas.1
$region0: #{stft_pallas.1}
  #allocation0 [shape = 'u32[]', space=smem, size = 0x4, offset = 0x4, fixed_abs, tag = 'smem constant byte address 0x4 - core index']
  #allocation1 [shape = 'u32[144,128]{1,0:T(1,128)}', space=vmem, size = 0x12000, scoped, tag = 'internal scratch']
  %s0 = inlined_call_operand.vmem [shape: f32[64,64], index: 0, kind: input, shape index: {}]
  %s1 = inlined_call_operand.vmem [shape: f32[6,64,128], index: 1, kind: input, shape index: {}]
  %s2 = inlined_call_operand.vmem [shape: f32[6,64,128], index: 2, kind: output, shape index: {}]
  %s3 = sld [smem:[#allocation0]]
  $region41: #{stft_pallas.1} parent=0
    _
  %s5 = ssub.s32 1, %s3
  %s6 = scalar_select 0, %s5, %s3
  loop: start=0, step=1, limit=8
  $region2: #{stft_pallas.1} parent=0 // loop_pre_header
    _
  $region3: #{stft_pallas.1} parent=0 // loop_header
    %s8 = sphi 0, %s12
    %p9 = scmp.ge.s32.totalorder %s8, 8
    %s15 = sphi 0, %s27
    %s16 = sphi 0, %s23
    %s17 = sphi 0, %s15
    %s18 = sphi 0, %s16
    %s19 = sphi 0, %s17
    %s20 = sphi 0, %s18
    %s28 = sphi 0, %s28
    %s30 = sphi 0, %s28
    %s31 = sphi 0, %s30
    %s45 = sphi 0, %s31
    %s53 = sphi 0, %s55
    %s56 = sphi 0, %s53
    %s57 = sphi 0, %s56
    %s73 = sphi 0, %s57
    %s81 = sphi 0, %s83
    %s84 = sphi 0, %s81
    %s85 = sphi 0, %s84
    %s101 = sphi 0, %s85
  $region4: #{stft_pallas.1} parent=0 // loop_header_branch
    %11 = sbr.rel (%p9) target = $region8
  $region5: #{stft_pallas.1} parent=0 // loop_body
    %s13 = ssub.s32 %s8, 1
    %s14 = ssub.s32 %s8, 2
    %s21 = sadd.s32 1, %s16
    %p22 = scmp.ge.s32.totalorder %s21, 1
    %s23 = scalar_select %p22, 0, %s21
    %s24 = sadd.s32 1, %s15
    %s25 = scalar_select %p22, %s24, %s15
    %p26 = scmp.ge.s32.totalorder %s25, 6
    %s27 = scalar_select %p26, 0, %s25
    %s29 = sadd.s32 %s28, 1
    %p32 = scmp.eq.s32.totalorder %s8, 5
    %p33 = scmp.ne.s32.totalorder %s28, %s30
    %p34 = scmp.eq.s32.totalorder %s8, 0
    %p35 = por %p33, %p34
    %p36 = scmp.ne.s32.totalorder %s28, %s30
    %p37 = scmp.eq.s32.totalorder %s13, 5
    %p38 = por %p36, %p37
    %p39 = scmp.ne.s32.totalorder %s30, %s31
    %p40 = scmp.eq.s32.totalorder %s13, 0
    %p41 = por %p39, %p40
    %p42 = scmp.ne.s32.totalorder %s30, %s31
    %p43 = scmp.eq.s32.totalorder %s14, 5
    %p44 = por %p42, %p43
    %p46 = scmp.ne.s32.totalorder %s31, %s45
    %p47 = scmp.eq.s32.totalorder %s14, 0
    %p48 = por %p46, %p47
    %s49 = ssub.s32 %s15, %s27
    %s50 = ssub.s32 %s16, %s23
    %s51 = sor.u32 %s49, %s50
    %p52 = scmp.eq.s32.totalorder %s51, 0
    %s54 = sadd.s32 %s53, 1
    %s55 = scalar_select %p52, %s53, %s54
    %p58 = pneg %p52
    %p59 = scmp.eq.s32.totalorder %s8, 5
    %p60 = por %p58, %p59
    %p61 = scmp.ne.s32.totalorder %s53, %s56
    %p62 = scmp.eq.s32.totalorder %s8, 0
    %p63 = por %p61, %p62
    %p64 = scmp.ne.s32.totalorder %s53, %s56
    %p65 = scmp.eq.s32.totalorder %s13, 5
    %p66 = por %p64, %p65
    %p67 = scmp.ne.s32.totalorder %s56, %s57
    %p68 = scmp.eq.s32.totalorder %s13, 0
    %p69 = por %p67, %p68
    %p70 = scmp.ne.s32.totalorder %s56, %s57
    %p71 = scmp.eq.s32.totalorder %s14, 5
    %p72 = por %p70, %p71
    %p74 = scmp.ne.s32.totalorder %s57, %s73
    %p75 = scmp.eq.s32.totalorder %s14, 0
    %p76 = por %p74, %p75
    %s77 = ssub.s32 %s15, %s27
    %s78 = ssub.s32 %s16, %s23
    %s79 = sor.u32 %s77, %s78
    %p80 = scmp.eq.s32.totalorder %s79, 0
    %s82 = sadd.s32 %s81, 1
    %s83 = scalar_select %p80, %s81, %s82
    %p86 = pneg %p80
    %p87 = scmp.eq.s32.totalorder %s8, 5
    %p88 = por %p86, %p87
    %p89 = scmp.ne.s32.totalorder %s81, %s84
    %p90 = scmp.eq.s32.totalorder %s8, 0
    %p91 = por %p89, %p90
    %p92 = scmp.ne.s32.totalorder %s81, %s84
    %p93 = scmp.eq.s32.totalorder %s13, 5
    %p94 = por %p92, %p93
    %p95 = scmp.ne.s32.totalorder %s84, %s85
    %p96 = scmp.eq.s32.totalorder %s13, 0
    %p97 = por %p95, %p96
    %p98 = scmp.ne.s32.totalorder %s84, %s85
    %p99 = scmp.eq.s32.totalorder %s14, 5
    %p100 = por %p98, %p99
    %p102 = scmp.ne.s32.totalorder %s85, %s101
    %p103 = scmp.eq.s32.totalorder %s14, 0
    %p104 = por %p102, %p103
    %p105 = scmp.le.s32.totalorder 1, %s8
    %p106 = scmp.lt.s32.totalorder %s8, 7
    %p107 = pnand %p105, %p106
    %p108 = pneg %p107
    // Predicated region
    $region9: #{stft_pallas.1} parent=5 // pred_check
      _
    $region10: #{stft_pallas.1} parent=5 // pred_check_branch
      %110 = sbr.rel (%p107) target = $region12
    $region11: #{stft_pallas.1} parent=5 // pred_region
      %s111 = ssub.s32 %s8, 1
      // Predicated region
      $region13: #{stft_pallas.1} parent=11 // pred_check
        %p112 = pneg %p41
      $region14: #{stft_pallas.1} parent=11 // pred_check_branch
        %114 = sbr.rel (%p112) target = $region16
      $region15: #{stft_pallas.1} parent=11 // pred_region
        _
      $region16: #{stft_pallas.1} parent=11 // pred_fallthru
        _
    $region12: #{stft_pallas.1} parent=5 // pred_fallthru
      _
    %p115 = scmp.lt.s32.totalorder %s8, 6
    // Predicated region
    $region17: #{stft_pallas.1} parent=5 // pred_check
      %p116 = pneg %p115
    $region18: #{stft_pallas.1} parent=5 // pred_check_branch
      %118 = sbr.rel (%p116) target = $region20
    $region19: #{stft_pallas.1} parent=5 // pred_region
      // Predicated region
      $region21: #{stft_pallas.1} parent=19 // pred_check
        %p119 = pneg %p63
      $region22: #{stft_pallas.1} parent=19 // pred_check_branch
        %121 = sbr.rel (%p119) target = $region24
      $region23: #{stft_pallas.1} parent=19 // pred_region
        %p122 = scmp.lt.s32.totalorder %s15, 5
        %s123 = scalar_select %p122, %s15, 5
        %p124 = scmp.lt.s32.totalorder %s16, 0
        %s125 = scalar_select %p124, %s16, 0
        %s126 = smul.addr %s123, 8
        %s127 = sadd.s32 %s125, %s126
        %s128 = smul.addr %s127, 8
        %s129 = scalar_lea.vmem %s1, %s128
      $region24: #{stft_pallas.1} parent=19 // pred_fallthru
        _
    $region20: #{stft_pallas.1} parent=5 // pred_fallthru
      _
    %p130 = scmp.le.s32.totalorder 1, %s8
    %p131 = scmp.lt.s32.totalorder %s8, 7
    %p132 = pnand %p130, %p131
    %p133 = pneg %p132
    // Predicated region
    $region25: #{stft_pallas.1} parent=5 // pred_check
      _
    $region26: #{stft_pallas.1} parent=5 // pred_check_branch
      %135 = sbr.rel (%p132) target = $region28
    $region27: #{stft_pallas.1} parent=5 // pred_region
      %s136 = ssub.s32 %s8, 1
      %p137 = pneg %p41
      %p138 = pneg %p38
      %p139 = scmp.lt.s32.totalorder %s17, 5
      %s140 = scalar_select %p139, %s17, 5
      %p141 = scmp.lt.s32.totalorder %s18, 0
      %s142 = scalar_select %p141, %s18, 0
      %s143 = smul.addr %s140, 8
      %s144 = sadd.s32 %s142, %s143
      %s145 = smul.addr %s144, 8
      %s146 = scalar_lea.vmem %s1, %s145
      %p147 = pneg %p69
      %p148 = pneg %p66
      %p149 = pneg %p97
      %p150 = pneg %p94
      %p151 = scmp.lt.s32.totalorder %s17, 5
      %s152 = scalar_select %p151, %s17, 5
      %p153 = scmp.lt.s32.totalorder %s18, 0
      %s154 = scalar_select %p153, %s18, 0
      %s155 = smul.addr %s152, 8
      %s156 = sadd.s32 %s154, %s155
      %s157 = smul.addr %s156, 8
      %s158 = scalar_lea.vmem %s2, %s157
      %p159 = scmp.lt.s32.totalorder %s17, 5
      %s160 = scalar_select %p159, %s17, 5
      %p161 = scmp.lt.s32.totalorder %s18, 0
      %s162 = scalar_select %p161, %s18, 0
      %s163 = smul.addr %s160, 8
      %s164 = sadd.s32 %s162, %s163
      %s165 = smul.addr %s164, 8
      %s166 = scalar_lea.vmem %s1, %s165
      %p167 = scmp.lt.s32.totalorder %s17, 5
      %s168 = scalar_select %p167, %s17, 5
      %p169 = scmp.lt.s32.totalorder %s18, 0
      %s170 = scalar_select %p169, %s18, 0
      %s171 = smul.addr %s168, 8
      %s172 = sadd.s32 %s170, %s171
      %s173 = smul.addr %s172, 8
      %s174 = scalar_lea.vmem %s2, %s173
      %v175 = vld [vmem:[%s0] sm:$0xff]
      %v176 = vld [vmem:[%s0 + $0x8] sm:$0xff]
      %v177 = vld [vmem:[%s0 + $0x10] sm:$0xff]
      %v178 = vld [vmem:[%s0 + $0x18] sm:$0xff]
      %v179 = vld [vmem:[%s0 + $0x20] sm:$0xff]
      %v180 = vld [vmem:[%s0 + $0x28] sm:$0xff]
      %v181 = vld [vmem:[%s0 + $0x30] sm:$0xff]
      %v182 = vld [vmem:[%s0 + $0x38] sm:$0xff]
      %v183 = vld [vmem:[%s166] sm:$0xff]
      %v184 = vld [vmem:[%s166 + $0x8] sm:$0xff]
      %v185 = vld [vmem:[%s166 + $0x10] sm:$0xff]
      %v186 = vld [vmem:[%s166 + $0x18] sm:$0xff]
      %v187 = vld [vmem:[%s166 + $0x20] sm:$0xff]
      %v188 = vld [vmem:[%s166 + $0x28] sm:$0xff]
      %v189 = vld [vmem:[%s166 + $0x30] sm:$0xff]
      %v190 = vld [vmem:[%s166 + $0x38] sm:$0xff]
      %vm191 = vcmask 523264
      %v193 = vsel %vm191, %v175, 0
      %v196 = vsel %vm191, %v176, 0
      %v199 = vsel %vm191, %v177, 0
      %v202 = vsel %vm191, %v178, 0
      %v205 = vsel %vm191, %v179, 0
      %v208 = vsel %vm191, %v180, 0
      %v211 = vsel %vm191, %v181, 0
      %v214 = vsel %vm191, %v182, 0
      %216 = vmatprep.subr.mxu0 0.0
      %217 = vmatpush1.msra.mxu0 %v183
      %218 = vmatprep.subr.mxu0 0.0
      %219 = vmatpush1.msra.mxu0 %v184
      %220 = vmatprep.subr.mxu0 0.0
      %221 = vmatpush1.msra.mxu0 %v185
      %222 = vmatprep.subr.mxu0 0.0
      %223 = vmatpush1.msra.mxu0 %v186
      %224 = vmatprep.subr.mxu0 0.0
      %225 = vmatpush1.msra.mxu0 %v187
      %226 = vmatprep.subr.mxu0 0.0
      %227 = vmatpush1.msra.mxu0 %v188
      %228 = vmatprep.subr.mxu0 0.0
      %229 = vmatpush1.msra.mxu0 %v189
      %230 = vmatprep.subr.mxu0 0.0
      %231 = vmatpush1.msra.mxu0 %v190
      %232 = vmatprep.subr.mxu0 0.0
      %233 = vmatpush1.msra.mxu0 0.0
      %234 = vmatprep.subr.mxu0 0.0
      %235 = vmatpush1.msra.mxu0 0.0
      %236 = vmatprep.subr.mxu0 0.0
      %237 = vmatpush1.msra.mxu0 0.0
      %238 = vmatprep.subr.mxu0 0.0
      %239 = vmatpush1.msra.mxu0 0.0
      %240 = vmatprep.subr.mxu0 0.0
      %241 = vmatpush1.msra.mxu0 0.0
      %242 = vmatprep.subr.mxu0 0.0
      %243 = vmatpush1.msra.mxu0 0.0
      %244 = vmatprep.subr.mxu0 0.0
      %245 = vmatpush1.msra.mxu0 0.0
      %246 = vmatprep.subr.mxu0 0.0
      %247 = vmatpush1.msra.mxu0 0.0
      %248 = vmatprep.subr.mxu0 0.0
      %249 = vmatpush1.msra.mxu0 0.0
      %250 = vmatprep.subr.mxu0 0.0
      %251 = vmatpush1.msra.mxu0 0.0
      %252 = vmatprep.subr.mxu0 0.0
      %253 = vmatpush1.msra.mxu0 0.0
      %254 = vmatprep.subr.mxu0 0.0
      %255 = vmatpush1.msra.mxu0 0.0
      %256 = vmatprep.subr.mxu0 0.0
      %257 = vmatpush1.msra.mxu0 0.0
      %258 = vmatprep.subr.mxu0 0.0
      %259 = vmatpush1.msra.mxu0 0.0
      %260 = vmatprep.subr.mxu0 0.0
      %261 = vmatpush1.msra.mxu0 0.0
      %262 = vmatprep.subr.mxu0 0.0
      %263 = vmatpush1.msra.mxu0 0.0
      %264 = vmatprep.subr.mxu0 0.0
      %265 = vmatpush1.msra.mxu0 0.0
      %266 = vmatprep.subr.mxu0 0.0
      %267 = vmatpush1.msra.mxu0 0.0
      %268 = vmatprep.subr.mxu0 0.0
      %269 = vmatpush1.msra.mxu0 0.0
      %270 = vmatprep.subr.mxu0 0.0
      %271 = vmatpush1.msra.mxu0 0.0
      %272 = vmatprep.subr.mxu0 0.0
      %273 = vmatpush1.msra.mxu0 0.0
      %274 = vmatprep.subr.mxu0 0.0
      %275 = vmatpush1.msra.mxu0 0.0
      %276 = vmatprep.subr.mxu0 0.0
      %277 = vmatpush1.msra.mxu0 0.0
      %278 = vmatprep.subr.mxu0 0.0
      %279 = vmatpush1.msra.mxu0 0.0
      %280 = vmatprep.mubr.f32.mxu0 0.0
      %281 = vmatmul.mubr.f32.gmra.mrb[0].mxu0 %v193
      %v282 = vpop.f32.mrb[0].mxu0
      %v283 = vadd.f32 0.0, %v282
      %v284 = vpop.f32.mrb[0].mxu0
      %285 = vmatprep.mubr.f32.mxu0 0.0
      %286 = vmatmul.mubr.f32.gmra.mrb[0].mxu0 %v196
      %v287 = vpop.f32.mrb[0].mxu0
      %v288 = vadd.f32 0.0, %v287
      %v289 = vpop.f32.mrb[0].mxu0
      %290 = vmatprep.mubr.f32.mxu0 0.0
      %291 = vmatmul.mubr.f32.gmra.mrb[0].mxu0 %v199
      %v292 = vpop.f32.mrb[0].mxu0
      %v293 = vadd.f32 0.0, %v292
      %v294 = vpop.f32.mrb[0].mxu0
      %295 = vmatprep.mubr.f32.mxu0 0.0
      %296 = vmatmul.mubr.f32.gmra.mrb[0].mxu0 %v202
      %v297 = vpop.f32.mrb[0].mxu0
      %v298 = vadd.f32 0.0, %v297
      %v299 = vpop.f32.mrb[0].mxu0
      %300 = vmatprep.mubr.f32.mxu0 0.0
      %301 = vmatmul.mubr.f32.gmra.mrb[0].mxu0 %v205
      %v302 = vpop.f32.mrb[0].mxu0
      %v303 = vadd.f32 0.0, %v302
      %v304 = vpop.f32.mrb[0].mxu0
      %305 = vmatprep.mubr.f32.mxu0 0.0
      %306 = vmatmul.mubr.f32.gmra.mrb[0].mxu0 %v208
      %v307 = vpop.f32.mrb[0].mxu0
      %v308 = vadd.f32 0.0, %v307
      %v309 = vpop.f32.mrb[0].mxu0
      %310 = vmatprep.mubr.f32.mxu0 0.0
      %311 = vmatmul.mubr.f32.gmra.mrb[0].mxu0 %v211
      %v312 = vpop.f32.mrb[0].mxu0
      %v313 = vadd.f32 0.0, %v312
      %v314 = vpop.f32.mrb[0].mxu0
      %315 = vmatprep.mubr.f32.mxu0 0.0
      %316 = vmatmul.mubr.f32.gmra.mrb[0].mxu0 %v214
      %v317 = vpop.f32.mrb[0].mxu0
      %v318 = vadd.f32 0.0, %v317
      %v319 = vpop.f32.mrb[0].mxu0
      %320 = vdwg.mxu0
      %321 = vst [vmem:[%s174] sm:$0xff] %v283
      %322 = vst [vmem:[%s174 + $0x8] sm:$0xff] %v288
      %323 = vst [vmem:[%s174 + $0x10] sm:$0xff] %v293
      %324 = vst [vmem:[%s174 + $0x18] sm:$0xff] %v298
      %325 = vst [vmem:[%s174 + $0x20] sm:$0xff] %v303
      %326 = vst [vmem:[%s174 + $0x28] sm:$0xff] %v308
      %327 = vst [vmem:[%s174 + $0x30] sm:$0xff] %v313
      %328 = vst [vmem:[%s174 + $0x38] sm:$0xff] %v318
      %p329 = scmp.lt.s32.totalorder %s17, 5
      %s330 = scalar_select %p329, %s17, 5
      %p331 = scmp.lt.s32.totalorder %s18, 0
      %s332 = scalar_select %p331, %s18, 0
      %s333 = smul.addr %s330, 8
      %s334 = sadd.s32 %s332, %s333
      %s335 = smul.addr %s334, 8
      %s336 = scalar_lea.vmem %s2, %s335
      // Predicated region
      $region29: #{stft_pallas.1} parent=27 // pred_check
        %p337 = pneg %p94
      $region30: #{stft_pallas.1} parent=27 // pred_check_branch
        %339 = sbr.rel (%p337) target = $region32
      $region31: #{stft_pallas.1} parent=27 // pred_region
        _
      $region32: #{stft_pallas.1} parent=27 // pred_fallthru
        _
    $region28: #{stft_pallas.1} parent=5 // pred_fallthru
      _
    %p340 = scmp.le.s32.totalorder 2, %s8
    // Predicated region
    $region33: #{stft_pallas.1} parent=5 // pred_check
      %p341 = pneg %p340
    $region34: #{stft_pallas.1} parent=5 // pred_check_branch
      %343 = sbr.rel (%p341) target = $region36
    $region35: #{stft_pallas.1} parent=5 // pred_region
      %s344 = ssub.s32 %s8, 2
      // Predicated region
      $region37: #{stft_pallas.1} parent=35 // pred_check
        %p345 = pneg %p100
      $region38: #{stft_pallas.1} parent=35 // pred_check_branch
        %347 = sbr.rel (%p345) target = $region40
      $region39: #{stft_pallas.1} parent=35 // pred_region
        %p348 = scmp.lt.s32.totalorder %s19, 5
        %s349 = scalar_select %p348, %s19, 5
        %p350 = scmp.lt.s32.totalorder %s20, 0
        %s351 = scalar_select %p350, %s20, 0
        %s352 = smul.addr %s349, 8
        %s353 = sadd.s32 %s351, %s352
        %s354 = smul.addr %s353, 8
        %s355 = scalar_lea.vmem %s2, %s354
      $region40: #{stft_pallas.1} parent=35 // pred_fallthru
        _
    $region36: #{stft_pallas.1} parent=5 // pred_fallthru
      _
  $region6: #{stft_pallas.1} parent=0 // loop_footer
    %s12 = sadd.s32 1, %s8
  $region7: #{stft_pallas.1} parent=0 // loop_footer_branch
    %7 = sbr.rel target = $region3
  $region8: #{stft_pallas.1} parent=0 // loop_exit
    _

</llo_original>
